<compile_context>
chip_gen: v6e
topology: v6e:2x2x1
jax: 0.10.0
libtpu: 0.0.40
codegen_flags: <defaults>
</compile_context>

<pallas_src>
import functools

import jax
import jax.numpy as jnp
from jax import lax
from jax.experimental import pallas as pl
from jax.experimental.pallas import tpu as pltpu


_VMEM_LIMIT = 48 * 1024 * 1024  # < 64 MiB physical on v7x; headroom on v5e/v6e
_LANES = 128


def _fit(dim, target):
    """Largest tile size <= target that divides dim (never the silent full-extent fallback)."""
    t = max(1, min(target, dim))
    while dim % t:
        t -= 1
    return t


def _head_cols(x, d):
    """Take a (tq, 128) lane-replicated stat and shape it to (tq, d)."""
    lanes = x.shape[-1]
    if d <= lanes:
        return x[:, :d]
    assert d % lanes == 0
    return jnp.tile(x, (1, d // lanes))


# ----------------------------- linear kernels ------------------------------


def _linear_kernel(x_ref, w_ref, o_ref, acc_ref):
    @pl.when(pl.program_id(2) == 0)
    def _():
        acc_ref[...] = jnp.zeros_like(acc_ref)

    # bf16 MXU operands, f32 accumulate.
    acc_ref[...] += jnp.dot(
        x_ref[...].astype(w_ref.dtype), w_ref[...],
        preferred_element_type=jnp.float32,
    )

    @pl.when(pl.program_id(2) == pl.num_programs(2) - 1)
    def _():
        o_ref[...] = acc_ref[...].astype(o_ref.dtype)


def _linear_bias_kernel(x_ref, w_ref, b_ref, o_ref, acc_ref):
    @pl.when(pl.program_id(2) == 0)
    def _():
        acc_ref[...] = jnp.zeros_like(acc_ref)

    acc_ref[...] += jnp.dot(
        x_ref[...].astype(w_ref.dtype), w_ref[...],
        preferred_element_type=jnp.float32,
    )

    @pl.when(pl.program_id(2) == pl.num_programs(2) - 1)
    def _():
        o_ref[...] = (acc_ref[...] + b_ref[...]).astype(o_ref.dtype)


def linear(x2d, w, b=None, *, out_dtype=None, tm=512, tn=256, tk=512):
    """y = x2d @ w (+ b). x2d: (M, Kin) any float dtype, w: (Kin, Kout) bf16."""
    m, kin = x2d.shape
    kout = w.shape[1]
    out_dtype = x2d.dtype if out_dtype is None else out_dtype
    tm = _fit(m, tm)
    tn = _fit(kout, tn)
    tk = _fit(kin, tk)
    grid = (m // tm, kout // tn, kin // tk)

    bytes_accessed = (
        m * kin * jnp.dtype(x2d.dtype).itemsize
        + kin * kout * jnp.dtype(w.dtype).itemsize
        + m * kout * jnp.dtype(out_dtype).itemsize
    )
    cost = pl.CostEstimate(
        flops=2 * m * kin * kout, transcendentals=0, bytes_accessed=bytes_accessed
    )

    x_spec = pl.BlockSpec((tm, tk), lambda i, j, k: (i, k))
    w_spec = pl.BlockSpec((tk, tn), lambda i, j, k: (k, j))
    common = dict(
        out_shape=jax.ShapeDtypeStruct((m, kout), out_dtype),
        grid=grid,
        out_specs=pl.BlockSpec((tm, tn), lambda i, j, k: (i, j)),
        scratch_shapes=[pltpu.VMEM((tm, tn), jnp.float32)],
        compiler_params=pltpu.CompilerParams(
            dimension_semantics=("parallel", "parallel", "arbitrary"),
            vmem_limit_bytes=_VMEM_LIMIT,
        ),
        cost_estimate=cost,
    )

    if b is None:
        return pl.pallas_call(
            _linear_kernel, in_specs=[x_spec, w_spec], **common
        )(x2d, w)

    b2d = b.reshape(1, kout).astype(jnp.float32)
    b_spec = pl.BlockSpec((1, tn), lambda i, j, k: (0, j))
    return pl.pallas_call(
        _linear_bias_kernel, in_specs=[x_spec, w_spec, b_spec], **common
    )(x2d, w, b2d)


# --------------------------- flash attention --------------------------------


def _flash_attn_kernel(q_ref, k_ref, v_ref, o_ref, m_sc, l_sc, acc_sc,
                       *, heads, dim_head):
    # q_ref/o_ref: (1, tq, h*d); k_ref/v_ref: (1, tkv, h*d)  (bf16).
    # m_sc/l_sc: (heads, tq, 128) lane-replicated f32; acc_sc: (heads, tq, d) f32.
    kv_step = pl.program_id(2)
    h, d = heads, dim_head
    tkv = k_ref.shape[1]

    @pl.when(kv_step == 0)
    def _():
        m_sc[...] = jnp.full(m_sc.shape, -jnp.inf, m_sc.dtype)
        l_sc[...] = jnp.zeros(l_sc.shape, l_sc.dtype)
        acc_sc[...] = jnp.zeros(acc_sc.shape, acc_sc.dtype)

    # TODO(synk): optional boolean attention mask (masked_fill with -finfo.max)
    # is not wired in; the reference forward with mask=None is reproduced.
    # NOTE: static Python loop over heads (small h); heads addressed via static
    # channel slices -> no host-side (b n (h d)) rearrange.
    for hi in range(h):
        lo = hi * d
        q_h = q_ref[0, :, lo:lo + d]          # scale already folded into w_q
        k_h = k_ref[0, :, lo:lo + d]
        v_h = v_ref[0, :, lo:lo + d]

        # QK^T contracting last dims (no explicit K transpose); bf16 -> f32.
        s = lax.dot_general(
            q_h, k_h,
            dimension_numbers=(((1,), (1,)), ((), ())),
            preferred_element_type=jnp.float32,
        )  # (tq, tkv) f32

        m_prev = m_sc[hi]                     # (tq, 128) lane-replicated
        l_prev = l_sc[hi]
        m_cur = jnp.max(s, axis=-1, keepdims=True)        # (tq, 1)
        m_next = jnp.maximum(m_prev, m_cur)               # (tq, 128)
        alpha = jnp.exp(m_prev - m_next)                  # (tq, 128)

        # Lane-dense broadcast of the running max across the kv tile.
        if tkv % _LANES == 0:
            m_b = m_next if tkv == _LANES else jnp.tile(m_next, (1, tkv // _LANES))
        else:  # tiny / non-aligned kv tiles (e.g. unit tests)
            m_b = m_next[:, :1]
        p = jnp.exp(s - m_b)                              # (tq, tkv) f32

        # Lane-dense stat updates (full-width stores, no masked 1-lane writes).
        l_sc[hi] = alpha * l_prev + jnp.sum(p, axis=-1, keepdims=True)
        m_sc[hi] = m_next

        pv = jnp.dot(p.astype(v_h.dtype), v_h,
                     preferred_element_type=jnp.float32)  # (tq, d) f32
        # Head-major accumulator: every head slab starts at lane 0.
        acc_sc[hi] = _head_cols(alpha, d) * acc_sc[hi] + pv

    @pl.when(kv_step == pl.num_programs(2) - 1)
    def _():
        for hi in range(h):
            lo = hi * d
            inv_l = pl.reciprocal(_head_cols(l_sc[hi], d), approx=False)
            o_ref[0, :, lo:lo + d] = (acc_sc[hi] * inv_l).astype(o_ref.dtype)


def multihead_attention(q, kv, *, heads, dim_head, tq=256, tkv=256):
    """q: (B, N, h*d), kv: (B, M, 2*h*d) fused K|V -> (B, N, h*d)."""
    B, N, HD = q.shape
    M = kv.shape[1]
    assert HD == heads * dim_head and kv.shape[-1] == 2 * HD
    tq = _fit(N, tq)
    tkv = _fit(M, tkv)

    q_spec = pl.BlockSpec((1, tq, HD), lambda b, i, j: (b, i, 0))
    o_spec = pl.BlockSpec((1, tq, HD), lambda b, i, j: (b, i, 0))
    if HD % 128 == 0:
        # Fused KV buffer read twice via channel-block offsets: block 0 = K,
        # block 1 = V.  No host-side split / extra HBM pass.
        k_arr, v_arr = kv, kv
        k_spec = pl.BlockSpec((1, tkv, HD), lambda b, i, j: (b, j, 0))
        v_spec = pl.BlockSpec((1, tkv, HD), lambda b, i, j: (b, j, 1))
    else:
        k_arr, v_arr = jnp.split(kv, 2, axis=-1)
        k_spec = pl.BlockSpec((1, tkv, HD), lambda b, i, j: (b, j, 0))
        v_spec = pl.BlockSpec((1, tkv, HD), lambda b, i, j: (b, j, 0))

    itemsize = jnp.dtype(q.dtype).itemsize
    cost = pl.CostEstimate(
        flops=4 * B * N * M * HD,                 # QK^T + PV
        transcendentals=B * heads * N * M,        # softmax exps
        bytes_accessed=(2 * B * N * HD + 2 * B * M * HD) * itemsize,
    )

    kern = functools.partial(_flash_attn_kernel, heads=heads, dim_head=dim_head)
    return pl.pallas_call(
        kern,
        out_shape=jax.ShapeDtypeStruct((B, N, HD), q.dtype),
        grid=(B, N // tq, M // tkv),
        in_specs=[q_spec, k_spec, v_spec],
        out_specs=o_spec,
        scratch_shapes=[
            pltpu.VMEM((heads, tq, _LANES), jnp.float32),    # m (lane-replicated)
            pltpu.VMEM((heads, tq, _LANES), jnp.float32),    # l (lane-replicated)
            pltpu.VMEM((heads, tq, dim_head), jnp.float32),  # acc (head-major)
        ],
        compiler_params=pltpu.CompilerParams(
            dimension_semantics=("parallel", "parallel", "arbitrary"),
            vmem_limit_bytes=_VMEM_LIMIT,
        ),
        cost_estimate=cost,
    )(q, k_arr, v_arr)


# ------------------------------- module -------------------------------------


class AttentionPallas:
    """Pallas re-implementation of the torch `Attention` module (drop_path=0)."""

    def __init__(self, query_dim, context_dim=None, heads=8, dim_head=64, *, key):
        inner_dim = dim_head * heads
        context_dim = query_dim if context_dim is None else context_dim
        self.scale = dim_head ** (-0.5)
        self.heads = heads
        self.dim_head = dim_head
        self.inner_dim = inner_dim
        k1, k2, k3, k4 = jax.random.split(key, 4)
        # f32 master weights (stored as (in, out) = torch W.T).
        self.w_q = 0.05 * jax.random.normal(k1, (query_dim, inner_dim), jnp.float32)
        self.w_kv = 0.05 * jax.random.normal(k2, (context_dim, 2 * inner_dim), jnp.float32)
        self.w_out = 0.05 * jax.random.normal(k3, (inner_dim, query_dim), jnp.float32)
        self.b_out = 0.05 * jax.random.normal(k4, (query_dim,), jnp.float32)
        # Kernel-side parameters: softmax scale folded into w_q, bf16 MXU operands.
        self._w_q_k = (self.w_q * self.scale).astype(jnp.bfloat16)
        self._w_kv_k = self.w_kv.astype(jnp.bfloat16)
        self._w_out_k = self.w_out.astype(jnp.bfloat16)

    def __call__(self, x, context=None):
        B, N, _ = x.shape
        ctx = x if context is None else context
        M = ctx.shape[1]
        HD = self.inner_dim

        # Q projection (scale pre-folded) and ONE fused KV projection.
        q = linear(x.reshape(B * N, -1), self._w_q_k,
                   out_dtype=jnp.bfloat16).reshape(B, N, HD)
        kv = linear(ctx.reshape(B * M, -1), self._w_kv_k,
                    out_dtype=jnp.bfloat16).reshape(B, M, 2 * HD)

        # Flash attention over the (B, T, h*d) layout (no host head rearrange).
        out = multihead_attention(q, kv, heads=self.heads, dim_head=self.dim_head)

        out = linear(out.reshape(B * N, HD), self._w_out_k, self.b_out,
                     out_dtype=x.dtype)
        return out.reshape(B, N, -1)  # drop_path_rate=0.0 -> Identity


# ------------------------------ reference -----------------------------------


def _reference(attn: AttentionPallas, x, context=None):
    """Pure-jnp f32 reference mirroring the torch forward (mask=None)."""
    B, N, _ = x.shape
    h, d = attn.heads, attn.dim_head
    ctx = x if context is None else context
    M = ctx.shape[1]
    q = x @ attn.w_q
    kv = ctx @ attn.w_kv
    k, v = jnp.split(kv, 2, axis=-1)

    def to_heads(t, nt):
        return t.reshape(B, nt, h, d).transpose(0, 2, 1, 3).reshape(B * h, nt, d)

    qh, kh, vh = to_heads(q, N), to_heads(k, M), to_heads(v, M)
    sim = jnp.einsum("bid,bjd->bij", qh, kh) * attn.scale
    a = jax.nn.softmax(sim, axis=-1)
    out = jnp.einsum("bij,bjd->bid", a, vh)
    out = out.reshape(B, h, N, d).transpose(0, 2, 1, 3).reshape(B, N, h * d)
    return out @ attn.w_out + attn.b_out


if __name__ == "__main__":
    key = jax.random.PRNGKey(0)
    k_param, k_x = jax.random.split(key)

    # Small shapes consistent with the module: B=2, tokens N=8, query_dim=32,
    # heads=2, dim_head=64 -> inner_dim=128 (lane-dense). Self-attention.
    B, N, query_dim, heads, dim_head = 2, 8, 32, 2, 64
    x = jax.random.normal(k_x, (B, N, query_dim), jnp.float32)

    attn = AttentionPallas(query_dim, heads=heads, dim_head=dim_head, key=k_param)
    out = jax.block_until_ready(attn(x))

    ref = _reference(attn, x)
    assert out.shape == (B, N, query_dim)
    # Tolerance accounts for bf16 matmul operands (f32 accumulation) in the
    # kernels vs the full-f32 reference.
    assert jnp.allclose(out, ref, atol=2e-2, rtol=2e-2), (
        "mismatch vs jnp reference; max abs diff = "
        f"{float(jnp.max(jnp.abs(out - ref)))}"
    )
    print("KERNEL_OK")
</pallas_src>

<mosaic_0001>
module attributes {stable_mosaic.version = 11 : i64} {
  func.func @_linear_kernel(%arg0: i32, %arg1: i32, %arg2: i32, %arg3: memref<16x32xf32, #tpu.memory_space<vmem>>, %arg4: memref<32x128xbf16, #tpu.memory_space<vmem>>, %arg5: memref<16x128xbf16, #tpu.memory_space<vmem>>, %arg6: memref<16x128xf32, #tpu.memory_space<vmem>>) attributes {dimension_semantics = [#tpu.dimension_semantics<parallel>, #tpu.dimension_semantics<parallel>, #tpu.dimension_semantics<arbitrary>], iteration_bounds = array<i64: 1, 1, 1>, scalar_prefetch = 0 : i64, scratch_operands = 1 : i64, tpu.core_type = #tpu.core_type<tc>, window_params = [{transform_indices = @transform_0, window_bounds = array<i64: 16, 32>}, {transform_indices = @transform_1, window_bounds = array<i64: 32, 128>}, {transform_indices = @transform_2, window_bounds = array<i64: 16, 128>}]} {
    %c0_i32 = arith.constant 0 : i32
    %0 = arith.cmpi eq, %arg2, %c0_i32 : i32
    %1 = arith.extui %0 : i1 to i32
    %c0_i32_0 = arith.constant 0 : i32
    %2 = arith.cmpi ne, %1, %c0_i32_0 : i32
    scf.if %2 {
      %cst_10 = arith.constant 0.000000e+00 : f32
      %13 = vector.broadcast %cst_10 : f32 to vector<16x128xf32>
      %c0_11 = arith.constant 0 : index
      %c0_12 = arith.constant 0 : index
      %14 = vector.load %arg6[%c0_11, %c0_12] : memref<16x128xf32, #tpu.memory_space<vmem>>, vector<16x128xf32>
      tpu.vector_store %arg6[%c0_11, %c0_12], %13 {strides = array<i32>} : memref<16x128xf32, #tpu.memory_space<vmem>>, vector<16x128xf32>,
    } else {
    }
    %c0 = arith.constant 0 : index
    %c0_1 = arith.constant 0 : index
    %3 = vector.load %arg6[%c0, %c0_1] : memref<16x128xf32, #tpu.memory_space<vmem>>, vector<16x128xf32>
    %c0_2 = arith.constant 0 : index
    %c0_3 = arith.constant 0 : index
    %4 = vector.load %arg3[%c0_2, %c0_3] : memref<16x32xf32, #tpu.memory_space<vmem>>, vector<16x32xf32>
    %5 = arith.truncf %4 : vector<16x32xf32> to vector<16x32xbf16>
    %c0_4 = arith.constant 0 : index
    %c0_5 = arith.constant 0 : index
    %6 = vector.load %arg4[%c0_4, %c0_5] : memref<32x128xbf16, #tpu.memory_space<vmem>>, vector<32x128xbf16>
    %cst = arith.constant dense<0.000000e+00> : vector<16x128xf32>
    %7 = tpu.matmul %5, %6, %cst {dimension_numbers = #tpu.dot_dimension_numbers<[1], [0], [0], [1], [0, 0, 1, 1], [], []>} : vector<16x32xbf16>, vector<32x128xbf16>, vector<16x128xf32> -> vector<16x128xf32>
    %8 = arith.addf %3, %7 : vector<16x128xf32>
    %c0_6 = arith.constant 0 : index
    %c0_7 = arith.constant 0 : index
    %9 = vector.load %arg6[%c0_6, %c0_7] : memref<16x128xf32, #tpu.memory_space<vmem>>, vector<16x128xf32>
    tpu.vector_store %arg6[%c0_6, %c0_7], %8 {strides = array<i32>} : memref<16x128xf32, #tpu.memory_space<vmem>>, vector<16x128xf32>,
    %c0_i32_8 = arith.constant 0 : i32
    %10 = arith.cmpi eq, %arg2, %c0_i32_8 : i32
    %11 = arith.extui %10 : i1 to i32
    %c0_i32_9 = arith.constant 0 : i32
    %12 = arith.cmpi ne, %11, %c0_i32_9 : i32
    scf.if %12 {
      %c0_10 = arith.constant 0 : index
      %c0_11 = arith.constant 0 : index
      %13 = vector.load %arg6[%c0_10, %c0_11] : memref<16x128xf32, #tpu.memory_space<vmem>>, vector<16x128xf32>
      %14 = arith.truncf %13 : vector<16x128xf32> to vector<16x128xbf16>
      %c0_12 = arith.constant 0 : index
      %c0_13 = arith.constant 0 : index
      %15 = vector.load %arg5[%c0_12, %c0_13] : memref<16x128xbf16, #tpu.memory_space<vmem>>, vector<16x128xbf16>
      tpu.vector_store %arg5[%c0_12, %c0_13], %14 {strides = array<i32>} : memref<16x128xbf16, #tpu.memory_space<vmem>>, vector<16x128xbf16>,
    } else {
    }
    return
  }
  func.func @transform_0(%arg0: i32, %arg1: i32, %arg2: i32) -> (i32, i32) {
    %c0_i32 = arith.constant 0 : i32
    return %arg0, %arg2 : i32, i32
  }
  func.func @transform_1(%arg0: i32, %arg1: i32, %arg2: i32) -> (i32, i32) {
    %c0_i32 = arith.constant 0 : i32
    return %arg2, %arg1 : i32, i32
  }
  func.func @transform_2(%arg0: i32, %arg1: i32, %arg2: i32) -> (i32, i32) {
    %c0_i32 = arith.constant 0 : i32
    return %arg0, %arg1 : i32, i32
  }
}

</mosaic_0001>

<llo_original>
// kernel: tpu_custom_call.1
$region0: #{tpu_custom_call.1}
  #allocation0 [shape = 'u32[]', space=smem, size = 0x4, offset = 0x4, fixed_abs, tag = 'smem constant byte address 0x4 - core index']
  #allocation1 [shape = 'u32[144,128]{1,0:T(1,128)}', space=vmem, size = 0x12000, scoped, tag = 'internal scratch']
  #allocation2 [shape = 'f32[16,128]{1,0:T(8,128)}', space=vmem, size = 0x2000, scoped, tag = 'scratch operand']
  %s0 = inlined_call_operand.hbm [shape: f32[16,32], index: 0, kind: input, shape index: {}]
  %s1 = inlined_call_operand.hbm [shape: bf16[32,128], index: 1, kind: input, shape index: {}]
  %s2 = inlined_call_operand.hbm [shape: bf16[16,128], index: 2, kind: output, shape index: {}]
  %s3 = sld [smem:[#allocation0]]
  $region34: #{tpu_custom_call.1} parent=0
    _
  %s5 = ssub.s32 1, %s3
  %s6 = scalar_select 0, %s5, %s3
  $region1: #{tpu_custom_call.1} parent=0
    #allocation3 [shape = 'u8[8192]{0}', space=vmem, size = 0x2000, scoped, tag = 'input window, operand 0, single buffered']
    #allocation4 [shape = 's32[1]{0}', space=sflag, size = 0x4, scoped, tag = 'scoped memory for tpu_custom_call.1']
    #allocation5 [shape = 's32[1]{0}', space=sflag, size = 0x4, scoped, tag = 'scoped memory for tpu_custom_call.1']
    #allocation6 [shape = 'u8[8192]{0}', space=vmem, size = 0x2000, scoped, tag = 'input window, operand 1, single buffered']
    #allocation7 [shape = 's32[1]{0}', space=sflag, size = 0x4, scoped, tag = 'scoped memory for tpu_custom_call.1']
    #allocation8 [shape = 'u8[4096]{0}', space=vmem, size = 0x1000, scoped, tag = 'output window, operand 0, single buffered']
    %7 = vsyncpa [#allocation4], 0
    %8 = vsyncpa [#allocation7], 0
    %9 = vsyncpa [#allocation5], 0
    // Predicated region
    $region2: #{tpu_custom_call.1} parent=1 // pred_check
      _
    $region3: #{tpu_custom_call.1} parent=1 // pred_check_branch
      %11 = sbr.rel (0) target = $region5
    $region4: #{tpu_custom_call.1} parent=1 // pred_region
      %s13 = ssub.s32 256, 256
      %14 = vsyncadd [#allocation4], %s13
      %s15 = sshll.u32 [#allocation3], 4
      %s16 = int_to_ptr.vmem [resolvable:$true] %s15
      %21 = dma.hbm_to_vmem [thread:$0]  %s0, 256, %s16, [#allocation4], 128, 128, 8
    $region5: #{tpu_custom_call.1} parent=1 // pred_fallthru
      _
    // Predicated region
    $region6: #{tpu_custom_call.1} parent=1 // pred_check
      _
    $region7: #{tpu_custom_call.1} parent=1 // pred_check_branch
      %23 = sbr.rel (0) target = $region9
    $region8: #{tpu_custom_call.1} parent=1 // pred_region
      %s25 = ssub.s32 256, 256
      %26 = vsyncadd [#allocation7], %s25
      %s27 = sshll.u32 [#allocation6], 4
      %s28 = int_to_ptr.vmem [resolvable:$true] %s27
      %33 = dma.hbm_to_vmem [thread:$0]  %s1, 256, %s28, [#allocation7], 64, 64, 4
    $region9: #{tpu_custom_call.1} parent=1 // pred_fallthru
      _
    // Predicated region
    $region10: #{tpu_custom_call.1} parent=1 // pred_check
      _
    $region11: #{tpu_custom_call.1} parent=1 // pred_check_branch
      %35 = sbr.rel (0) target = $region13
    $region12: #{tpu_custom_call.1} parent=1 // pred_region
      %36 = dma.done [#allocation4], 256
    $region13: #{tpu_custom_call.1} parent=1 // pred_fallthru
      _
    // Predicated region
    $region14: #{tpu_custom_call.1} parent=1 // pred_check
      _
    $region15: #{tpu_custom_call.1} parent=1 // pred_check_branch
      %38 = sbr.rel (0) target = $region17
    $region16: #{tpu_custom_call.1} parent=1 // pred_region
      %39 = dma.done [#allocation7], 256
    $region17: #{tpu_custom_call.1} parent=1 // pred_fallthru
      _
    %p41 = scmp.eq.s32.totalorder 0, 0
    // Predicated region
    $region18: #{tpu_custom_call.1} parent=1 // pred_check
      %p42 = pneg %p41
    $region19: #{tpu_custom_call.1} parent=1 // pred_check_branch
      %44 = sbr.rel (%p42) target = $region21
    $region20: #{tpu_custom_call.1} parent=1 // pred_region
      %45 = vst [vmem:[#allocation2] sm:$0xff] 0.0
      %46 = vst [vmem:[#allocation2 + $0x8] sm:$0xff] 0.0
    $region21: #{tpu_custom_call.1} parent=1 // pred_fallthru
      _
    %v47 = vld [vmem:[#allocation2] sm:$0xff]
    %v48 = vld [vmem:[#allocation2 + $0x8] sm:$0xff]
    %v49 = vld [vmem:[#allocation3] sm:$0xff]
    %v50 = vld [vmem:[#allocation3 + $0x8] sm:$0xff]
    %v51 = vpack.c.bf16 %v50, %v49
    %v52 = vld [vmem:[#allocation6] sm:$0xf]
    %v53 = vld [vmem:[#allocation6 + $0x4] sm:$0xf]
    %v54 = vld [vmem:[#allocation6 + $0x8] sm:$0xf]
    %v55 = vld [vmem:[#allocation6 + $0xc] sm:$0xf]
    %v60 = vunpack.c.l.b16 %v52
    %v61 = vunpack.c.l.b16 %v53
    %v62 = vunpack.c.l.b16 %v54
    %v63 = vunpack.c.l.b16 %v55
    %v64 = vpack.c.b16 %v61, %v60
    %v65 = vpack.c.b16 %v63, %v62
    %vm68 = vcmask 261120
    %v70 = vsel %vm68, %v51, 0
    %72 = vmatprep.subr.bf16.mxu0 0
    %73 = vmatpush1.bf16.msra.mxu0 0
    %74 = vmatprep.subr.bf16.mxu0 0
    %75 = vmatpush1.bf16.msra.mxu0 0
    %76 = vmatprep.subr.bf16.mxu0 0
    %77 = vmatpush1.bf16.msra.mxu0 0
    %78 = vmatprep.subr.bf16.mxu0 0
    %79 = vmatpush1.bf16.msra.mxu0 0
    %80 = vmatprep.subr.bf16.mxu0 0
    %81 = vmatpush1.bf16.msra.mxu0 0
    %82 = vmatprep.subr.bf16.mxu0 0
    %83 = vmatpush1.bf16.msra.mxu0 0
    %84 = vmatprep.subr.bf16.mxu0 0
    %85 = vmatpush1.bf16.msra.mxu0 %v65
    %86 = vmatprep.subr.bf16.mxu0 0
    %87 = vmatpush1.bf16.msra.mxu0 %v64
    %88 = vmatprep.subr.bf16.mxu0 0
    %89 = vmatpush2.bf16.msra.mxu0 0
    %90 = vmatprep.subr.bf16.mxu0 0
    %91 = vmatpush2.bf16.msra.mxu0 0
    %92 = vmatprep.subr.bf16.mxu0 0
    %93 = vmatpush2.bf16.msra.mxu0 0
    %94 = vmatprep.subr.bf16.mxu0 0
    %95 = vmatpush2.bf16.msra.mxu0 0
    %96 = vmatprep.subr.bf16.mxu0 0
    %97 = vmatpush2.bf16.msra.mxu0 0
    %98 = vmatprep.subr.bf16.mxu0 0
    %99 = vmatpush2.bf16.msra.mxu0 0
    %100 = vmatprep.subr.bf16.mxu0 0
    %101 = vmatpush2.bf16.msra.mxu0 0
    %102 = vmatprep.subr.bf16.mxu0 0
    %103 = vmatpush2.bf16.msra.mxu0 0
    %104 = vmatprep.mubr.bf16.mxu0 0
    %105 = vmatmul.mubr.bf16.gmra.mxu0 %v70
    %v106 = vpop.f32.mrf.mxu0
    %v107 = vadd.f32 0.0, %v106
    %v108 = vpop.f32.mrf.mxu0
    %v109 = vpop.f32.mrf.mxu0
    %v110 = vadd.f32 0.0, %v109
    %v111 = vpop.f32.mrf.mxu0
    %112 = vdwg.mxu0
    %v113 = vadd.f32 %v47, %v107
    %v114 = vadd.f32 %v48, %v110
    %115 = vst [vmem:[#allocation2] sm:$0xff] %v113
    %116 = vst [vmem:[#allocation2 + $0x8] sm:$0xff] %v114
    // Predicated region
    $region22: #{tpu_custom_call.1} parent=1 // pred_check
      %p117 = pneg %p41
    $region23: #{tpu_custom_call.1} parent=1 // pred_check_branch
      %119 = sbr.rel (%p117) target = $region25
    $region24: #{tpu_custom_call.1} parent=1 // pred_region
      %v120 = vld [vmem:[#allocation2] sm:$0xff]
      %v121 = vld [vmem:[#allocation2 + $0x8] sm:$0xff]
      %v122 = vpack.c.bf16 %v121, %v120
      %v124 = vunpack.c.l.b16 %v122
      %v125 = vunpack.c.h.b16 %v122
      %v126 = vpack.c.b16 %v124, %v124
      %v127 = vpack.c.b16 %v125, %v125
      %130 = vst [vmem:[#allocation8] sm:$0xf] %v126
      %131 = vst [vmem:[#allocation8 + $0x4] sm:$0xf] %v127
    $region25: #{tpu_custom_call.1} parent=1 // pred_fallthru
      _
    // Predicated region
    $region26: #{tpu_custom_call.1} parent=1 // pred_check
      _
    $region27: #{tpu_custom_call.1} parent=1 // pred_check_branch
      %133 = sbr.rel (0) target = $region29
    $region28: #{tpu_custom_call.1} parent=1 // pred_region
      %s135 = ssub.s32 128, 128
      %136 = vsyncadd [#allocation5], %s135
      %s137 = sshll.u32 [#allocation8], 4
      %s138 = int_to_ptr.vmem [resolvable:$true] %s137
      %143 = dma.vmem_to_hbm [thread:$0]  %s138, 128, %s2, [#allocation5], 64, 64, 4
    $region29: #{tpu_custom_call.1} parent=1 // pred_fallthru
      _
    // Predicated region
    $region30: #{tpu_custom_call.1} parent=1 // pred_check
      _
    $region31: #{tpu_custom_call.1} parent=1 // pred_check_branch
      %145 = sbr.rel (0) target = $region33
    $region32: #{tpu_custom_call.1} parent=1 // pred_region
      %146 = dma.done [#allocation5], 128
    $region33: #{tpu_custom_call.1} parent=1 // pred_fallthru
      _
    %147 = vsyncpa [#allocation4], 1
    %148 = vsyncpa [#allocation7], 1
    %149 = vsyncpa [#allocation5], 1

</llo_original>
